<compile_context>
chip_gen: v7x
topology: tpu7x:2x2x1
jax: 0.10.0
libtpu: 0.0.40
codegen_flags: <defaults>
</compile_context>

<pallas_src>
import functools

import jax
import jax.numpy as jnp
from jax.experimental import pallas as pl
from jax.experimental.pallas import tpu as pltpu

EPS = 1e-7

# Conservative per-call VMEM budget used only for tile sizing; keeps the pipeline well
# under the default scoped VMEM on v5e (16 MiB raised below), v6e (32 MiB) and v7x (32 MiB
# scoped / 64 MiB physical).
_VMEM_TILE_BUDGET = 20 * 1024 * 1024
_VMEM_LIMIT_BYTES = 32 * 1024 * 1024
_MAX_TILE_B = 1024


def _round_up(x, m):
    return ((x + m - 1) // m) * m


def _choose_tile_b(batch, n_class, in_itemsize, tgt_itemsize, with_count_p):
    # Double-buffered inputs + target (+ f32 count_p output) streams per batch row.
    per_row = 2 * n_class * (in_itemsize + tgt_itemsize + (4 if with_count_p else 0))
    tile = _VMEM_TILE_BUDGET // max(per_row, 1)
    tile = int(min(max(tile, 8), _MAX_TILE_B))
    tile = (tile // 8) * 8                      # sublane aligned
    return min(tile, _round_up(batch, 8))


def _pad_rows(x, padded_rows, value):
    rows = x.shape[0]
    if padded_rows == rows:
        return x
    pad = jnp.full((padded_rows - rows, x.shape[1]), value, dtype=x.dtype)
    return jnp.concatenate([x, pad], axis=0)


def _bce_rowsum(count_p_f32, target_f32, *, batch, tile_b, binary_target):
    """Clipped BCE, masked to real rows, summed over the tile's batch rows -> (1, C)."""
    logit = jnp.clip(count_p_f32, EPS, 1.0 - EPS)
    if binary_target:
        # Binary labels: one log per element instead of two (halves EUP traffic).
        bce = -jnp.log(jnp.where(target_f32 >= 0.5, logit, 1.0 - logit))
    else:
        # Soft labels: full two-term BCE.
        bce = -(target_f32 * jnp.log(logit) + (1.0 - target_f32) * jnp.log(1.0 - logit))
    if batch % tile_b != 0:
        # Mask padded rows out of the reduction (only the last tile has any).
        row = (jax.lax.broadcasted_iota(jnp.int32, (tile_b, 1), 0)
               + pl.program_id(0) * tile_b)
        bce = jnp.where(row < batch, bce, 0.0)
    return jnp.sum(bce, axis=0, keepdims=True)


def _dep_loss_alpha_kernel(x_ref, t_ref, a_ref, cp_ref, lp_ref, *,
                           batch, tile_b, inv_n_class, binary_target):
    # count_p = (x @ alpha) * (1/n_class): MXU matmul in the operand dtype (bf16 OK),
    # f32 accumulation, scale by a precomputed reciprocal (cheap vmul, no divide).
    cp = jnp.dot(x_ref[...], a_ref[...], preferred_element_type=jnp.float32)
    cp = cp * jnp.float32(inv_n_class)
    cp_ref[...] = cp
    lp_ref[0] = _bce_rowsum(cp, t_ref[...].astype(jnp.float32),
                            batch=batch, tile_b=tile_b, binary_target=binary_target)


def _dep_loss_identity_kernel(x_ref, t_ref, lp_ref, *, batch, tile_b, binary_target):
    # alpha is None: count_p == inputs, so only the fused BCE reduction is needed
    # (no MXU matmul, no alpha HBM read, no count_p writeback).
    x = x_ref[...].astype(jnp.float32)
    lp_ref[0] = _bce_rowsum(x, t_ref[...].astype(jnp.float32),
                            batch=batch, tile_b=tile_b, binary_target=binary_target)


def dependent_loss(inputs, target, alpha=None, *, binary_target=True, tile_b=None):
    """Pallas implementation of DependentLoss.forward.

    Returns (count_loss: scalar f32, count_p: (batch, n_class)).
    binary_target=True assumes labels in {0, 1}; pass False for soft labels.
    """
    batch, n_class = inputs.shape
    inv_batch = jnp.float32(1.0 / batch)
    with_alpha = alpha is not None

    if tile_b is None:
        tile_b = _choose_tile_b(batch, n_class, inputs.dtype.itemsize,
                                target.dtype.itemsize, with_alpha)
    tile_b = max(8, (int(tile_b) // 8) * 8)
    padded_batch = _round_up(batch, tile_b)
    num_tiles = padded_batch // tile_b

    # Pad the batch dimension to a whole number of tiles; padded rows are masked out of
    # the loss inside the kernel and sliced off count_p below.
    x = _pad_rows(inputs, padded_batch, 0.5)
    t = _pad_rows(target, padded_batch, 0)

    compiler_params = pltpu.CompilerParams(
        dimension_semantics=("parallel",),        # batch tiles are independent
        vmem_limit_bytes=_VMEM_LIMIT_BYTES,
    )

    row_spec = pl.BlockSpec((tile_b, n_class), lambda i: (i, 0))
    # Per-tile partial loss sums: last two block dims equal the full dims.
    part_spec = pl.BlockSpec((1, 1, n_class), lambda i: (i, 0, 0))
    part_shape = jax.ShapeDtypeStruct((num_tiles, 1, n_class), jnp.float32)

    if not with_alpha:
        loss_parts = pl.pallas_call(
            functools.partial(_dep_loss_identity_kernel, batch=batch,
                              tile_b=tile_b, binary_target=binary_target),
            out_shape=part_shape,
            grid=(num_tiles,),
            in_specs=[row_spec, row_spec],
            out_specs=part_spec,
            compiler_params=compiler_params,
        )(x, t)
        count_loss = jnp.sum(loss_parts) * inv_batch
        return count_loss, inputs                 # count_p is exactly the inputs

    alpha_m = alpha.astype(inputs.dtype)          # matmul runs in the operand dtype
    count_p_pad, loss_parts = pl.pallas_call(
        functools.partial(_dep_loss_alpha_kernel, batch=batch, tile_b=tile_b,
                          inv_n_class=1.0 / n_class, binary_target=binary_target),
        out_shape=(
            jax.ShapeDtypeStruct((padded_batch, n_class), jnp.float32),
            part_shape,
        ),
        grid=(num_tiles,),
        in_specs=[row_spec, row_spec,
                  pl.BlockSpec((n_class, n_class), lambda i: (0, 0))],
        out_specs=(row_spec, part_spec),
        compiler_params=compiler_params,
    )(x, t, alpha_m)

    count_loss = jnp.sum(loss_parts) * inv_batch
    count_p = count_p_pad[:batch] if padded_batch != batch else count_p_pad
    return count_loss, count_p


def _reference(inputs, target, alpha):
    """Pure-JAX reference mirroring the PyTorch module."""
    inputs = inputs.astype(jnp.float32)
    target = target.astype(jnp.float32)
    n_class = inputs.shape[1]
    if alpha is not None:
        count_p = (inputs @ alpha.astype(jnp.float32)) / n_class
    else:
        count_p = inputs
    logit = jnp.clip(count_p, EPS, 1.0 - EPS)
    bce = -(target * jnp.log(logit) + (1.0 - target) * jnp.log(1.0 - logit))
    return jnp.sum(jnp.mean(bce, axis=0)), count_p


if __name__ == "__main__":
    key = jax.random.PRNGKey(0)
    k1, k2, k3, k4, k5 = jax.random.split(key, 5)

    # Case 1: aligned small shapes, f32, explicit alpha.
    batch, n_class = 8, 8
    inputs = jax.nn.sigmoid(jax.random.normal(k1, (batch, n_class), dtype=jnp.float32))
    target = (jax.random.uniform(k2, (batch, n_class)) > 0.5).astype(jnp.float32)
    alpha = jax.nn.softmax(jax.random.normal(k3, (n_class, n_class), dtype=jnp.float32), axis=0)

    loss, count_p = dependent_loss(inputs, target, alpha)
    jax.block_until_ready((loss, count_p))
    ref_loss, ref_p = _reference(inputs, target, alpha)
    assert jnp.allclose(count_p, ref_p, atol=1e-5, rtol=1e-5), "count_p mismatch"
    assert jnp.allclose(loss, ref_loss, atol=1e-5, rtol=1e-5), "count_loss mismatch"

    # Soft-label (two-term BCE) path on the same binary data gives the same answer.
    loss_soft, _ = dependent_loss(inputs, target, alpha, binary_target=False)
    jax.block_until_ready(loss_soft)
    assert jnp.allclose(loss_soft, ref_loss, atol=1e-5, rtol=1e-5), "soft-label loss mismatch"

    # Case 2: alpha=None -> loss-only kernel, count_p passes through exactly.
    loss_n, count_p_n = dependent_loss(inputs, target, None)
    jax.block_until_ready((loss_n, count_p_n))
    ref_loss_n, ref_p_n = _reference(inputs, target, None)
    assert jnp.allclose(count_p_n, ref_p_n), "alpha=None count_p mismatch"
    assert jnp.allclose(loss_n, ref_loss_n, atol=1e-5, rtol=1e-5), "alpha=None loss mismatch"

    # Case 3: ragged batch + forced small tile -> multi-tile grid with row masking.
    b2, c2 = 20, 12
    inputs2 = jax.nn.sigmoid(jax.random.normal(k4, (b2, c2), dtype=jnp.float32))
    target2 = (jax.random.uniform(k5, (b2, c2)) > 0.5).astype(jnp.float32)
    alpha2 = jax.nn.softmax(jax.random.normal(k3, (c2, c2), dtype=jnp.float32), axis=0)
    loss2, count_p2 = dependent_loss(inputs2, target2, alpha2, tile_b=8)
    jax.block_until_ready((loss2, count_p2))
    ref_loss2, ref_p2 = _reference(inputs2, target2, alpha2)
    assert jnp.allclose(count_p2, ref_p2, atol=1e-5, rtol=1e-5), "ragged count_p mismatch"
    assert jnp.allclose(loss2, ref_loss2, atol=1e-5, rtol=1e-5), "ragged loss mismatch"

    # Case 4: bf16 matmul operands (f32 accumulate, f32 BCE math) -- loose tolerance.
    inputs_bf = inputs.astype(jnp.bfloat16)
    alpha_bf = alpha.astype(jnp.bfloat16)
    loss_bf, count_p_bf = dependent_loss(inputs_bf, target, alpha_bf)
    jax.block_until_ready((loss_bf, count_p_bf))
    ref_loss_bf, ref_p_bf = _reference(inputs_bf, target, alpha_bf)
    assert jnp.allclose(count_p_bf, ref_p_bf, atol=5e-2, rtol=5e-2), "bf16 count_p mismatch"
    assert jnp.allclose(loss_bf, ref_loss_bf, atol=5e-2, rtol=5e-2), "bf16 loss mismatch"

    print("KERNEL_OK")
</pallas_src>

<mosaic_0001>
module attributes {stable_mosaic.version = 11 : i64} {
  func.func @_dep_loss_alpha_kernel(%arg0: i32, %arg1: memref<8x8xf32, #tpu.memory_space<vmem>>, %arg2: memref<8x8xf32, #tpu.memory_space<vmem>>, %arg3: memref<8x8xf32, #tpu.memory_space<vmem>>, %arg4: memref<8x8xf32, #tpu.memory_space<vmem>>, %arg5: memref<1x1x8xf32, #tpu.memory_space<vmem>>) attributes {dimension_semantics = [#tpu.dimension_semantics<parallel>], iteration_bounds = array<i64: 1>, scalar_prefetch = 0 : i64, scratch_operands = 0 : i64, tpu.core_type = #tpu.core_type<tc>, window_params = [{transform_indices = @transform_0, window_bounds = array<i64: 8, 8>}, {transform_indices = @transform_1, window_bounds = array<i64: 8, 8>}, {pipeline_mode = #tpu.pipeline_mode<synchronous>, transform_indices = @transform_2, window_bounds = array<i64: 8, 8>}, {transform_indices = @transform_3, window_bounds = array<i64: 8, 8>}, {transform_indices = @transform_4, window_bounds = array<i64: 1, 1, 8>}]} {
    %c0 = arith.constant 0 : index
    %c0_0 = arith.constant 0 : index
    %0 = vector.load %arg1[%c0, %c0_0] : memref<8x8xf32, #tpu.memory_space<vmem>>, vector<8x8xf32>
    %c0_1 = arith.constant 0 : index
    %c0_2 = arith.constant 0 : index
    %1 = vector.load %arg3[%c0_1, %c0_2] : memref<8x8xf32, #tpu.memory_space<vmem>>, vector<8x8xf32>
    %cst = arith.constant dense<0.000000e+00> : vector<8x8xf32>
    %2 = tpu.matmul %0, %1, %cst {dimension_numbers = #tpu.dot_dimension_numbers<[1], [0], [0], [1], [0, 0, 1, 1], [], []>} : vector<8x8xf32>, vector<8x8xf32>, vector<8x8xf32> -> vector<8x8xf32>
    %cst_3 = arith.constant 1.250000e-01 : f32
    %3 = vector.broadcast %cst_3 : f32 to vector<8x8xf32>
    %4 = arith.mulf %2, %3 : vector<8x8xf32>
    %c0_4 = arith.constant 0 : index
    %c0_5 = arith.constant 0 : index
    %5 = vector.load %arg4[%c0_4, %c0_5] : memref<8x8xf32, #tpu.memory_space<vmem>>, vector<8x8xf32>
    tpu.vector_store %arg4[%c0_4, %c0_5], %4 {strides = array<i32>} : memref<8x8xf32, #tpu.memory_space<vmem>>, vector<8x8xf32>,
    %c0_6 = arith.constant 0 : index
    %c0_7 = arith.constant 0 : index
    %6 = vector.load %arg2[%c0_6, %c0_7] : memref<8x8xf32, #tpu.memory_space<vmem>>, vector<8x8xf32>
    %cst_8 = arith.constant 1.000000e-07 : f32
    %cst_9 = arith.constant 0.99999988 : f32
    %7 = vector.broadcast %cst_8 : f32 to vector<8x8xf32>
    %8 = arith.maximumf %7, %4 : vector<8x8xf32>
    %9 = vector.broadcast %cst_9 : f32 to vector<8x8xf32>
    %10 = arith.minimumf %9, %8 : vector<8x8xf32>
    %cst_10 = arith.constant 5.000000e-01 : f32
    %11 = vector.broadcast %cst_10 : f32 to vector<8x8xf32>
    %12 = arith.cmpf oge, %6, %11 : vector<8x8xf32>
    %cst_11 = arith.constant 1.000000e+00 : f32
    %13 = vector.broadcast %cst_11 : f32 to vector<8x8xf32>
    %14 = arith.subf %13, %10 : vector<8x8xf32>
    %15 = arith.select %12, %10, %14 : vector<8x8xi1>, vector<8x8xf32>
    %16 = math.log %15 : vector<8x8xf32>
    %cst_12 = arith.constant 0.000000e+00 : f32
    %17 = vector.broadcast %cst_12 : f32 to vector<8x8xf32>
    %18 = arith.subf %17, %16 : vector<8x8xf32>
    %cst_13 = arith.constant dense<0.000000e+00> : vector<8xf32>
    %19 = vector.multi_reduction <add>, %18, %cst_13 [0] : vector<8x8xf32> to vector<8xf32>
    %20 = vector.shape_cast %19 : vector<8xf32> to vector<1x8xf32>
    %c0_14 = arith.constant 0 : index
    %c0_15 = arith.constant 0 : index
    %c0_16 = arith.constant 0 : index
    %21 = vector.load %arg5[%c0_14, %c0_15, %c0_16] : memref<1x1x8xf32, #tpu.memory_space<vmem>>, vector<1x1x8xf32>
    %22 = vector.shape_cast %21 : vector<1x1x8xf32> to vector<1x8xf32>
    %23 = vector.shape_cast %20 : vector<1x8xf32> to vector<1x1x8xf32>
    tpu.vector_store %arg5[%c0_14, %c0_15, %c0_16], %23 {strides = array<i32>} : memref<1x1x8xf32, #tpu.memory_space<vmem>>, vector<1x1x8xf32>,
    return
  }
  func.func @transform_0(%arg0: i32) -> (i32, i32) {
    %c0_i32 = arith.constant 0 : i32
    %c0_i32_0 = arith.constant 0 : i32
    return %arg0, %c0_i32 : i32, i32
  }
  func.func @transform_1(%arg0: i32) -> (i32, i32) {
    %c0_i32 = arith.constant 0 : i32
    %c0_i32_0 = arith.constant 0 : i32
    return %arg0, %c0_i32 : i32, i32
  }
  func.func @transform_2(%arg0: i32) -> (i32, i32) {
    %c0_i32 = arith.constant 0 : i32
    %c0_i32_0 = arith.constant 0 : i32
    %c0_i32_1 = arith.constant 0 : i32
    return %c0_i32, %c0_i32_0 : i32, i32
  }
  func.func @transform_3(%arg0: i32) -> (i32, i32) {
    %c0_i32 = arith.constant 0 : i32
    %c0_i32_0 = arith.constant 0 : i32
    return %arg0, %c0_i32 : i32, i32
  }
  func.func @transform_4(%arg0: i32) -> (i32, i32, i32) {
    %c0_i32 = arith.constant 0 : i32
    %c0_i32_0 = arith.constant 0 : i32
    %c0_i32_1 = arith.constant 0 : i32
    return %arg0, %c0_i32, %c0_i32_0 : i32, i32, i32
  }
}

</mosaic_0001>

<llo_original>
// kernel: tpu_custom_call.1
$region0: #{tpu_custom_call.1}
  #allocation0 [shape = 'u32[]', space=smem, size = 0x4, offset = 0x4, fixed_abs, tag = 'smem constant byte address 0x4 - core index']
  #allocation1 [shape = 'u32[144,128]{1,0:T(1,128)}', space=vmem, size = 0x12000, scoped, tag = 'internal scratch']
  %s0 = inlined_call_operand.hbm [shape: f32[8,8], index: 0, kind: input, shape index: {}]
  %s1 = inlined_call_operand.hbm [shape: f32[8,8], index: 1, kind: input, shape index: {}]
  %s2 = inlined_call_operand.hbm [shape: f32[8,8], index: 2, kind: input, shape index: {}]
  %s3 = inlined_call_operand.hbm [shape: f32[8,8], index: 3, kind: output, shape index: {0}]
  %s4 = inlined_call_operand.hbm [shape: f32[1,1,8], index: 4, kind: output, shape index: {1}]
  %5 = xla_tuple %s3, %s4
  %s6 = sld [smem:[#allocation0]]
  $region42: #{tpu_custom_call.1} parent=0
    _
  %s8 = ssub.s32 1, %s6
  %s9 = scalar_select 0, %s8, %s6
  $region1: #{tpu_custom_call.1} parent=0
    #allocation2 [shape = 'u8[4096]{0}', space=vmem, size = 0x1000, scoped, tag = 'input window, operand 0, single buffered']
    #allocation3 [shape = 's32[1]{0}', space=sflag, size = 0x4, scoped, tag = 'scoped memory for tpu_custom_call.1']
    #allocation4 [shape = 's32[1]{0}', space=sflag, size = 0x4, scoped, tag = 'scoped memory for tpu_custom_call.1']
    #allocation5 [shape = 'u8[4096]{0}', space=vmem, size = 0x1000, scoped, tag = 'input window, operand 1, single buffered']
    #allocation6 [shape = 's32[1]{0}', space=sflag, size = 0x4, scoped, tag = 'scoped memory for tpu_custom_call.1']
    #allocation7 [shape = 'u8[4096]{0}', space=vmem, size = 0x1000, scoped, tag = 'input window, operand 2, single buffered']
    #allocation8 [shape = 'u8[4096]{0}', space=vmem, size = 0x1000, scoped, tag = 'output window, operand 0, single buffered']
    #allocation9 [shape = 'u8[512]{0}', space=vmem, size = 0x400, scoped, tag = 'output window, operand 1, single buffered']
    #allocation10 [shape = 's32[1]{0}', space=sflag, size = 0x4, scoped, tag = 'scoped memory for tpu_custom_call.1']
    %10 = vsyncpa [#allocation3], 0
    %11 = vsyncpa [#allocation6], 0
    %12 = vsyncpa [#allocation4], 0
    %13 = vsyncpa [#allocation10], 0
    // Predicated region
    $region2: #{tpu_custom_call.1} parent=1 // pred_check
      _
    $region3: #{tpu_custom_call.1} parent=1 // pred_check_branch
      %15 = sbr.rel (0) target = $region5
    $region4: #{tpu_custom_call.1} parent=1 // pred_region
      %s17 = ssub.s32 128, 128
      %18 = vsyncadd [#allocation3], %s17
      %s20 = sshll.u32 [#allocation2], 4
      %s21 = int_to_ptr.vmem [resolvable:$true] %s20
      %23 = dma.hbm_to_vmem [thread:$0]  %s0, 128, %s21, [#allocation3]
    $region5: #{tpu_custom_call.1} parent=1 // pred_fallthru
      _
    // Predicated region
    $region6: #{tpu_custom_call.1} parent=1 // pred_check
      _
    $region7: #{tpu_custom_call.1} parent=1 // pred_check_branch
      %25 = sbr.rel (0) target = $region9
    $region8: #{tpu_custom_call.1} parent=1 // pred_region
      %s27 = ssub.s32 128, 128
      %28 = vsyncadd [#allocation6], %s27
      %s30 = sshll.u32 [#allocation5], 4
      %s31 = int_to_ptr.vmem [resolvable:$true] %s30
      %33 = dma.hbm_to_vmem [thread:$0]  %s1, 128, %s31, [#allocation6]
    $region9: #{tpu_custom_call.1} parent=1 // pred_fallthru
      _
    // Predicated region
    $region10: #{tpu_custom_call.1} parent=1 // pred_check
      _
    $region11: #{tpu_custom_call.1} parent=1 // pred_check_branch
      %35 = sbr.rel (0) target = $region13
    $region12: #{tpu_custom_call.1} parent=1 // pred_region
      %s37 = ssub.s32 128, 128
      %38 = vsyncadd [#allocation6], %s37
      %s40 = sshll.u32 [#allocation7], 4
      %s41 = int_to_ptr.vmem [resolvable:$true] %s40
      %43 = dma.hbm_to_vmem [thread:$0]  %s2, 128, %s41, [#allocation6]
    $region13: #{tpu_custom_call.1} parent=1 // pred_fallthru
      _
    // Predicated region
    $region14: #{tpu_custom_call.1} parent=1 // pred_check
      _
    $region15: #{tpu_custom_call.1} parent=1 // pred_check_branch
      %45 = sbr.rel (0) target = $region17
    $region16: #{tpu_custom_call.1} parent=1 // pred_region
      %46 = dma.done [#allocation3], 128
    $region17: #{tpu_custom_call.1} parent=1 // pred_fallthru
      _
    // Predicated region
    $region18: #{tpu_custom_call.1} parent=1 // pred_check
      _
    $region19: #{tpu_custom_call.1} parent=1 // pred_check_branch
      %48 = sbr.rel (0) target = $region21
    $region20: #{tpu_custom_call.1} parent=1 // pred_region
      %49 = dma.done [#allocation6], 128
    $region21: #{tpu_custom_call.1} parent=1 // pred_fallthru
      _
    // Predicated region
    $region22: #{tpu_custom_call.1} parent=1 // pred_check
      _
    $region23: #{tpu_custom_call.1} parent=1 // pred_check_branch
      %51 = sbr.rel (0) target = $region25
    $region24: #{tpu_custom_call.1} parent=1 // pred_region
      %52 = dma.done [#allocation6], 128
    $region25: #{tpu_custom_call.1} parent=1 // pred_fallthru
      _
    %v53 = vld [vmem:[#allocation2] sm:$0xff]
    %v54 = vld [vmem:[#allocation7] sm:$0xff]
    %vm55 = vcmask 64512
    %v57 = vsel %vm55, %v53, 0
    %59 = vmatprep.subr.mxu0 0.0
    %60 = vmatpush1.msra.mxu0 %v54
    %61 = vmatprep.subr.mxu0 0.0
    %62 = vmatpush1.msra.mxu0 0.0
    %63 = vmatprep.subr.mxu0 0.0
    %64 = vmatpush1.msra.mxu0 0.0
    %65 = vmatprep.subr.mxu0 0.0
    %66 = vmatpush1.msra.mxu0 0.0
    %67 = vmatprep.subr.mxu0 0.0
    %68 = vmatpush1.msra.mxu0 0.0
    %69 = vmatprep.subr.mxu0 0.0
    %70 = vmatpush1.msra.mxu0 0.0
    %71 = vmatprep.subr.mxu0 0.0
    %72 = vmatpush1.msra.mxu0 0.0
    %73 = vmatprep.subr.mxu0 0.0
    %74 = vmatpush1.msra.mxu0 0.0
    %75 = vmatprep.subr.mxu0 0.0
    %76 = vmatpush1.msra.mxu0 0.0
    %77 = vmatprep.subr.mxu0 0.0
    %78 = vmatpush1.msra.mxu0 0.0
    %79 = vmatprep.subr.mxu0 0.0
    %80 = vmatpush1.msra.mxu0 0.0
    %81 = vmatprep.subr.mxu0 0.0
    %82 = vmatpush1.msra.mxu0 0.0
    %83 = vmatprep.subr.mxu0 0.0
    %84 = vmatpush1.msra.mxu0 0.0
    %85 = vmatprep.subr.mxu0 0.0
    %86 = vmatpush1.msra.mxu0 0.0
    %87 = vmatprep.subr.mxu0 0.0
    %88 = vmatpush1.msra.mxu0 0.0
    %89 = vmatprep.subr.mxu0 0.0
    %90 = vmatpush1.msra.mxu0 0.0
    %91 = vmatprep.subr.mxu0 0.0
    %92 = vmatpush1.msra.mxu0 0.0
    %93 = vmatprep.subr.mxu0 0.0
    %94 = vmatpush1.msra.mxu0 0.0
    %95 = vmatprep.subr.mxu0 0.0
    %96 = vmatpush1.msra.mxu0 0.0
    %97 = vmatprep.subr.mxu0 0.0
    %98 = vmatpush1.msra.mxu0 0.0
    %99 = vmatprep.subr.mxu0 0.0
    %100 = vmatpush1.msra.mxu0 0.0
    %101 = vmatprep.subr.mxu0 0.0
    %102 = vmatpush1.msra.mxu0 0.0
    %103 = vmatprep.subr.mxu0 0.0
    %104 = vmatpush1.msra.mxu0 0.0
    %105 = vmatprep.subr.mxu0 0.0
    %106 = vmatpush1.msra.mxu0 0.0
    %107 = vmatprep.subr.mxu0 0.0
    %108 = vmatpush1.msra.mxu0 0.0
    %109 = vmatprep.subr.mxu0 0.0
    %110 = vmatpush1.msra.mxu0 0.0
    %111 = vmatprep.subr.mxu0 0.0
    %112 = vmatpush1.msra.mxu0 0.0
    %113 = vmatprep.subr.mxu0 0.0
    %114 = vmatpush1.msra.mxu0 0.0
    %115 = vmatprep.subr.mxu0 0.0
    %116 = vmatpush1.msra.mxu0 0.0
    %117 = vmatprep.subr.mxu0 0.0
    %118 = vmatpush1.msra.mxu0 0.0
    %119 = vmatprep.subr.mxu0 0.0
    %120 = vmatpush1.msra.mxu0 0.0
    %121 = vmatprep.subr.mxu0 0.0
    %122 = vmatpush1.msra.mxu0 0.0
    %123 = vmatprep.mubr.f32.mxu0 0.0
    %124 = vmatmul.mubr.f32.gmra.mrb[0].mxu0 %v57
    %v125 = vpop.f32.mrb[0].mxu0
    %v126 = vadd.f32 0.0, %v125
    %v127 = vpop.f32.mrb[0].mxu0
    %128 = vdwg.mxu0
    %v129 = vmul.f32 %v126, 0.125
    %130 = vst.msk [vmem:[#allocation8] sm:$0xff] %vm55, %v129
    %v131 = vld [vmem:[#allocation5] sm:$0xff]
    %v132 = vmax.f32 %v129, 1e-07
    %v133 = vmin.f32 %v132, 0.9999999
    %vm134 = vcmp.ge.f32.partialorder %v131, 0.5
    %v135 = vsub.f32 1.0, %v133
    %v136 = vsel %vm134, %v133, %v135
    %v137 = vlog2.pop %v136
    %v138 = vmul.f32 %v137, 0.6931472
    %v139 = vsub.f32 0.0, %v138
    %v140 = vsel %vm55, %v139, 0.0
    %v141 = vrot.slane %v140, 4
    %v142 = vadd.f32 %v140, %v141
    %v143 = vrot.slane %v142, 2
    %v144 = vadd.f32 %v142, %v143
    %v145 = vrot.slane %v144, 1
    %v146 = vadd.f32 %v144, %v145
    %vm147 = vcmask 57344
    %148 = vst.msk [vmem:[#allocation9] sm:$0x1] %vm147, %v146
    // Predicated region
    $region26: #{tpu_custom_call.1} parent=1 // pred_check
      _
    $region27: #{tpu_custom_call.1} parent=1 // pred_check_branch
      %150 = sbr.rel (0) target = $region29
    $region28: #{tpu_custom_call.1} parent=1 // pred_region
      %s152 = ssub.s32 128, 128
      %153 = vsyncadd [#allocation4], %s152
      %s155 = sshll.u32 [#allocation8], 4
      %s156 = int_to_ptr.vmem [resolvable:$true] %s155
      %158 = dma.vmem_to_hbm [thread:$0]  %s156, 128, %s3, [#allocation4]
    $region29: #{tpu_custom_call.1} parent=1 // pred_fallthru
      _
    // Predicated region
    $region30: #{tpu_custom_call.1} parent=1 // pred_check
      _
    $region31: #{tpu_custom_call.1} parent=1 // pred_check_branch
      %160 = sbr.rel (0) target = $region33
    $region32: #{tpu_custom_call.1} parent=1 // pred_region
      %s162 = ssub.s32 16, 16
      %163 = vsyncadd [#allocation10], %s162
      %s165 = sshll.u32 [#allocation9], 4
      %s166 = int_to_ptr.vmem [resolvable:$true] %s165
      %168 = dma.vmem_to_hbm [thread:$0]  %s166, 16, %s4, [#allocation10]
    $region33: #{tpu_custom_call.1} parent=1 // pred_fallthru
      _
    // Predicated region
    $region34: #{tpu_custom_call.1} parent=1 // pred_check
      _
    $region35: #{tpu_custom_call.1} parent=1 // pred_check_branch
      %170 = sbr.rel (0) target = $region37
    $region36: #{tpu_custom_call.1} parent=1 // pred_region
      %171 = dma.done [#allocation4], 128
    $region37: #{tpu_custom_call.1} parent=1 // pred_fallthru
      _
    // Predicated region
    $region38: #{tpu_custom_call.1} parent=1 // pred_check
      _
    $region39: #{tpu_custom_call.1} parent=1 // pred_check_branch
      %173 = sbr.rel (0) target = $region41
    $region40: #{tpu_custom_call.1} parent=1 // pred_region
      %174 = dma.done [#allocation10], 16
    $region41: #{tpu_custom_call.1} parent=1 // pred_fallthru
      _
    %175 = vsyncpa [#allocation3], 1
    %176 = vsyncpa [#allocation6], 1
    %177 = vsyncpa [#allocation4], 1
    %178 = vsyncpa [#allocation10], 1

</llo_original>
